<compile_context>
chip_gen: v5e
topology: v5e:2x2
jax: 0.10.0
libtpu: 0.0.40
codegen_flags: <defaults>
</compile_context>

<pallas_src>
import functools

import jax
import jax.numpy as jnp
from jax.experimental import pallas as pl
from jax.experimental.pallas import tpu as pltpu


def _round_up(a, b):
    return ((a + b - 1) // b) * b


def _cdiv(a, b):
    return -(-a // b)


def _msegdl_kernel(m_ref, x_ref, t_ref, out_ref, acc_ref, *,
                   M, H, W, tb, acc_rows, steps, lambda_mse, needs_row_mask):
    s = pl.program_id(1)
    HW = H * W

    @pl.when(s == 0)
    def _():
        acc_ref[...] = jnp.zeros_like(acc_ref)

    x = x_ref[...].astype(jnp.float32)
    t = t_ref[...].astype(jnp.float32)
    e = x - t                               # diff is linear: d(x) - d(t) == d(x - t)

    if needs_row_mask:
        # Only emitted when the grid over-covers M (since we no longer pad in
        # the wrapper).  Zeroes whole garbage / duplicated rows of boundary
        # blocks; one compare on a (tb, 1) iota + one select per vreg.
        blk = pl.program_id(0) * steps + s
        row = jax.lax.broadcasted_iota(jnp.int32, (tb, 1), 0) + blk * tb
        e = jnp.where(row < M, e, 0.0)

    # Neighbour along W (flattened j+1) and along H (flattened j+W) via XLU
    # rolls -- no unaligned slices.  The resident masks (already scaled by
    # lambda_gdl) zero the wraparound column / last image row.
    d_w = pltpu.roll(e, shift=HW - 1, axis=1) - e   # d_w[:, j] = e[:, j+1] - e[:, j]
    d_h = pltpu.roll(e, shift=HW - W, axis=1) - e   # d_h[:, j] = e[:, j+W] - e[:, j]

    m = m_ref[...]
    mw = m[0:1, :]                          # (1, HW) = lambda_gdl * (col % W != W-1)
    mh = m[1:2, :]                          # (1, HW) = lambda_gdl * (col <  (H-1)*W)

    contrib = (jnp.float32(lambda_mse) * (e * e)
               + (d_w * d_w) * mw
               + (d_h * d_h) * mh)

    if tb != acc_rows:
        # Fold the block's rows down to the small accumulator: whole-vreg VPU
        # adds only (no cross-lane work).
        contrib = contrib.reshape(tb // acc_rows, acc_rows, HW).sum(axis=0)
    acc_ref[...] += contrib

    @pl.when(s == pl.num_programs(1) - 1)
    def _():
        total = jnp.sum(acc_ref[...])
        out_ref[...] = jnp.broadcast_to(total, out_ref.shape)


def msegdl_loss(inputs, targets, lambda_mse=1.0, lambda_gdl=1.0):
    assert inputs.shape == targets.shape
    N, C, H, W = inputs.shape
    HW = H * W
    M = N * C
    numel = N * C * H * W
    itemsize = jnp.dtype(inputs.dtype).itemsize

    # Free (metadata-only) reshape to the lane-dense 2-D view -- no padding,
    # no extra HBM read/write of the inputs.
    x = inputs.reshape(M, HW)
    t = targets.reshape(M, HW)

    # Edge masks (with lambda_gdl folded in) precomputed once; passed as a
    # tiny resident input (constant index_map => fetched once, never
    # recomputed per step).
    col = jnp.arange(HW, dtype=jnp.int32)
    mask_w = jnp.where((col % W) != (W - 1), jnp.float32(lambda_gdl), 0.0)
    mask_h = jnp.where(col < (H - 1) * W, jnp.float32(lambda_gdl), 0.0)
    masks = jnp.stack([mask_w, mask_h]).astype(jnp.float32)      # (2, HW)

    # Block sizing from the actual chip: ~1/16 of VMEM per input block
    # (8 MiB on 128 MiB v5e/v6e, 4 MiB on 64 MiB-per-TC v7x).  Live VMEM is
    # ~ 2 inputs x 2 pipeline buffers x block + tiny (8, HW) accumulator.
    try:
        vmem_cap = pltpu.get_tpu_info().vmem_capacity_bytes
    except Exception:
        vmem_cap = 64 * 1024 * 1024
    target_block_bytes = max(2 * 1024 * 1024, vmem_cap // 16)
    vmem_limit = min(vmem_cap * 3 // 4, 100 * 1024 * 1024)

    tb_cap = max(8, (target_block_bytes // (HW * itemsize)) // 8 * 8)

    # Chunk/step/tile selection that minimises dead rows (no jnp.pad at all).
    # TODO(synk): on v7x, switch the leading grid axis to pltpu.CORE_PARALLEL
    # if the trace shows one idle TensorCore ("parallel" alone may not shard).
    nsplit = 2 if M >= 16 else 1
    steps = max(1, _cdiv(_cdiv(M, nsplit), tb_cap))
    tb = _round_up(_cdiv(M, nsplit * steps), 8)
    if nsplit * steps == 1:
        tb = M                    # exact single block (== full row extent)
    nblocks = _cdiv(M, tb)
    steps = _cdiv(nblocks, nsplit)
    needs_row_mask = (nsplit * steps * tb) != M
    acc_rows = 8 if tb % 8 == 0 else tb

    # Block index map; clamp only when the balanced grid has a dead trailing
    # block (it then revisits the last valid block, whose rows the in-kernel
    # row mask zeroes).
    if nsplit * steps > nblocks:
        blk_map = lambda c, s: (jnp.minimum(c * steps + s, nblocks - 1), 0)
    else:
        blk_map = lambda c, s: (c * steps + s, 0)

    kernel = functools.partial(
        _msegdl_kernel,
        M=M, H=H, W=W, tb=tb, acc_rows=acc_rows, steps=steps,
        lambda_mse=float(lambda_mse), needs_row_mask=needs_row_mask)

    cost = pl.CostEstimate(
        flops=12 * numel,
        transcendentals=0,
        bytes_accessed=2 * numel * itemsize + masks.size * 4
                       + nsplit * 8 * 128 * 4)

    out = pl.pallas_call(
        kernel,
        out_shape=jax.ShapeDtypeStruct((nsplit, 8, 128), jnp.float32),
        grid_spec=pltpu.PrefetchScalarGridSpec(
            num_scalar_prefetch=0,
            grid=(nsplit, steps),
            in_specs=[
                pl.BlockSpec((2, HW), lambda c, s: (0, 0)),   # resident masks
                pl.BlockSpec((tb, HW), blk_map),
                pl.BlockSpec((tb, HW), blk_map),
            ],
            out_specs=pl.BlockSpec((1, 8, 128), lambda c, s: (c, 0, 0)),
            scratch_shapes=[pltpu.VMEM((acc_rows, HW), jnp.float32)],
        ),
        compiler_params=pltpu.CompilerParams(
            dimension_semantics=("parallel", "arbitrary"),
            vmem_limit_bytes=int(vmem_limit),
        ),
        cost_estimate=cost,
    )(masks, x, t)

    # Each chunk wrote its lambda-weighted partial sum (broadcast over its tile).
    return jnp.sum(out[:, 0, 0]) / numel


def msegdl_ref(inputs, targets, lambda_mse=1.0, lambda_gdl=1.0):
    se = jnp.sum((inputs - targets) ** 2)
    gi = jnp.sum((jnp.diff(inputs, axis=-1) - jnp.diff(targets, axis=-1)) ** 2)
    gj = jnp.sum((jnp.diff(inputs, axis=-2) - jnp.diff(targets, axis=-2)) ** 2)
    return (lambda_mse * se + lambda_gdl * gi + lambda_gdl * gj) / inputs.size


if __name__ == "__main__":
    key = jax.random.PRNGKey(0)
    k1, k2 = jax.random.split(key)
    shape = (2, 4, 16, 16)  # N, C, H, W
    inputs = jax.random.normal(k1, shape, dtype=jnp.float32)
    targets = jax.random.normal(k2, shape, dtype=jnp.float32)

    loss = msegdl_loss(inputs, targets, lambda_mse=1.0, lambda_gdl=1.0)
    loss = jax.block_until_ready(loss)

    ref = msegdl_ref(inputs, targets, lambda_mse=1.0, lambda_gdl=1.0)
    assert jnp.isfinite(loss)
    assert jnp.allclose(loss, ref, rtol=1e-5, atol=1e-6), (loss, ref)

    print("KERNEL_OK")
</pallas_src>

<mosaic_0001>
module attributes {stable_mosaic.version = 11 : i64} {
  func.func @_msegdl_kernel(%arg0: i32, %arg1: i32, %arg2: memref<2x256xf32, #tpu.memory_space<vmem>>, %arg3: memref<8x256xf32, #tpu.memory_space<vmem>>, %arg4: memref<8x256xf32, #tpu.memory_space<vmem>>, %arg5: memref<1x8x128xf32, #tpu.memory_space<vmem>>, %arg6: memref<8x256xf32, #tpu.memory_space<vmem>>) attributes {dimension_semantics = [#tpu.dimension_semantics<parallel>, #tpu.dimension_semantics<arbitrary>], iteration_bounds = array<i64: 1, 1>, scalar_prefetch = 0 : i64, scratch_operands = 1 : i64, tpu.core_type = #tpu.core_type<tc>, window_params = [{pipeline_mode = #tpu.pipeline_mode<synchronous>, transform_indices = @transform_0, window_bounds = array<i64: 2, 256>}, {transform_indices = @transform_1, window_bounds = array<i64: 8, 256>}, {transform_indices = @transform_2, window_bounds = array<i64: 8, 256>}, {transform_indices = @transform_3, window_bounds = array<i64: 1, 8, 128>}]} {
    %c0_i32 = arith.constant 0 : i32
    %0 = arith.cmpi eq, %arg1, %c0_i32 : i32
    %1 = arith.extui %0 : i1 to i32
    %c0_i32_0 = arith.constant 0 : i32
    %2 = arith.cmpi ne, %1, %c0_i32_0 : i32
    scf.if %2 {
      %cst_12 = arith.constant 0.000000e+00 : f32
      %30 = vector.broadcast %cst_12 : f32 to vector<8x256xf32>
      %c0_13 = arith.constant 0 : index
      %c0_14 = arith.constant 0 : index
      %31 = vector.load %arg6[%c0_13, %c0_14] : memref<8x256xf32, #tpu.memory_space<vmem>>, vector<8x256xf32>
      tpu.vector_store %arg6[%c0_13, %c0_14], %30 {strides = array<i32>} : memref<8x256xf32, #tpu.memory_space<vmem>>, vector<8x256xf32>,
    } else {
    }
    %c0 = arith.constant 0 : index
    %c0_1 = arith.constant 0 : index
    %3 = vector.load %arg3[%c0, %c0_1] : memref<8x256xf32, #tpu.memory_space<vmem>>, vector<8x256xf32>
    %c0_2 = arith.constant 0 : index
    %c0_3 = arith.constant 0 : index
    %4 = vector.load %arg4[%c0_2, %c0_3] : memref<8x256xf32, #tpu.memory_space<vmem>>, vector<8x256xf32>
    %5 = arith.subf %3, %4 : vector<8x256xf32>
    %c255_i32 = arith.constant 255 : i32
    %6 = tpu.dynamic_rotate %5 by %c255_i32 dim 1 : vector<8x256xf32>, i32 -> vector<8x256xf32>
    %7 = arith.subf %6, %5 : vector<8x256xf32>
    %c240_i32 = arith.constant 240 : i32
    %8 = tpu.dynamic_rotate %5 by %c240_i32 dim 1 : vector<8x256xf32>, i32 -> vector<8x256xf32>
    %9 = arith.subf %8, %5 : vector<8x256xf32>
    %c0_4 = arith.constant 0 : index
    %c0_5 = arith.constant 0 : index
    %10 = vector.load %arg2[%c0_4, %c0_5] : memref<2x256xf32, #tpu.memory_space<vmem>>, vector<2x256xf32>
    %11 = vector.extract_strided_slice %10 {offsets = [0, 0], sizes = [1, 256], strides = [1, 1]} : vector<2x256xf32> to vector<1x256xf32>
    %12 = vector.extract_strided_slice %10 {offsets = [1, 0], sizes = [1, 256], strides = [1, 1]} : vector<2x256xf32> to vector<1x256xf32>
    %13 = arith.mulf %5, %5 : vector<8x256xf32>
    %cst = arith.constant 1.000000e+00 : f32
    %14 = vector.broadcast %cst : f32 to vector<8x256xf32>
    %15 = arith.mulf %14, %13 : vector<8x256xf32>
    %16 = arith.mulf %7, %7 : vector<8x256xf32>
    %17 = vector.broadcast %11 : vector<1x256xf32> to vector<8x256xf32>
    %18 = arith.mulf %16, %17 : vector<8x256xf32>
    %19 = arith.addf %15, %18 : vector<8x256xf32>
    %20 = arith.mulf %9, %9 : vector<8x256xf32>
    %21 = vector.broadcast %12 : vector<1x256xf32> to vector<8x256xf32>
    %22 = arith.mulf %20, %21 : vector<8x256xf32>
    %23 = arith.addf %19, %22 : vector<8x256xf32>
    %c0_6 = arith.constant 0 : index
    %c0_7 = arith.constant 0 : index
    %24 = vector.load %arg6[%c0_6, %c0_7] : memref<8x256xf32, #tpu.memory_space<vmem>>, vector<8x256xf32>
    %25 = arith.addf %24, %23 : vector<8x256xf32>
    %c0_8 = arith.constant 0 : index
    %c0_9 = arith.constant 0 : index
    %26 = vector.load %arg6[%c0_8, %c0_9] : memref<8x256xf32, #tpu.memory_space<vmem>>, vector<8x256xf32>
    tpu.vector_store %arg6[%c0_8, %c0_9], %25 {strides = array<i32>} : memref<8x256xf32, #tpu.memory_space<vmem>>, vector<8x256xf32>,
    %c0_i32_10 = arith.constant 0 : i32
    %27 = arith.cmpi eq, %arg1, %c0_i32_10 : i32
    %28 = arith.extui %27 : i1 to i32
    %c0_i32_11 = arith.constant 0 : i32
    %29 = arith.cmpi ne, %28, %c0_i32_11 : i32
    scf.if %29 {
      %c0_12 = arith.constant 0 : index
      %c0_13 = arith.constant 0 : index
      %30 = vector.load %arg6[%c0_12, %c0_13] : memref<8x256xf32, #tpu.memory_space<vmem>>, vector<8x256xf32>
      %31 = vector.shape_cast %30 : vector<8x256xf32> to vector<1x8x256xf32>
      %cst_14 = arith.constant dense<0.000000e+00> : vector<1xf32>
      %32 = vector.multi_reduction <add>, %31, %cst_14 [1, 2] : vector<1x8x256xf32> to vector<1xf32>
      %33 = vector.shape_cast %32 : vector<1xf32> to vector<1x1x1xf32>
      %34 = vector.extract %33[0, 0, 0] : f32 from vector<1x1x1xf32>
      %35 = vector.broadcast %34 : f32 to vector<1x8x128xf32>
      %c0_15 = arith.constant 0 : index
      %c0_16 = arith.constant 0 : index
      %c0_17 = arith.constant 0 : index
      %36 = vector.load %arg5[%c0_15, %c0_16, %c0_17] : memref<1x8x128xf32, #tpu.memory_space<vmem>>, vector<1x8x128xf32>
      tpu.vector_store %arg5[%c0_15, %c0_16, %c0_17], %35 {strides = array<i32>} : memref<1x8x128xf32, #tpu.memory_space<vmem>>, vector<1x8x128xf32>,
    } else {
    }
    return
  }
  func.func @transform_0(%arg0: i32, %arg1: i32) -> (i32, i32) {
    %c0_i32 = arith.constant 0 : i32
    %c0_i32_0 = arith.constant 0 : i32
    %c0_i32_1 = arith.constant 0 : i32
    return %c0_i32, %c0_i32_0 : i32, i32
  }
  func.func @transform_1(%arg0: i32, %arg1: i32) -> (i32, i32) {
    %c1_i32 = arith.constant 1 : i32
    %0 = arith.muli %arg0, %c1_i32 : i32
    %1 = arith.addi %0, %arg1 : i32
    %c0_i32 = arith.constant 0 : i32
    %c0_i32_0 = arith.constant 0 : i32
    return %1, %c0_i32 : i32, i32
  }
  func.func @transform_2(%arg0: i32, %arg1: i32) -> (i32, i32) {
    %c1_i32 = arith.constant 1 : i32
    %0 = arith.muli %arg0, %c1_i32 : i32
    %1 = arith.addi %0, %arg1 : i32
    %c0_i32 = arith.constant 0 : i32
    %c0_i32_0 = arith.constant 0 : i32
    return %1, %c0_i32 : i32, i32
  }
  func.func @transform_3(%arg0: i32, %arg1: i32) -> (i32, i32, i32) {
    %c0_i32 = arith.constant 0 : i32
    %c0_i32_0 = arith.constant 0 : i32
    %c0_i32_1 = arith.constant 0 : i32
    return %arg0, %c0_i32, %c0_i32_0 : i32, i32, i32
  }
}

</mosaic_0001>

<llo_original>
// kernel: tpu_custom_call.1
$region0: #{tpu_custom_call.1}
  #allocation0 [shape = 'u32[]', space=smem, size = 0x4, offset = 0x4, fixed_abs, tag = 'smem constant byte address 0x4 - core index']
  #allocation1 [shape = 'u32[72,128]{1,0:T(1,128)}', space=vmem, size = 0x9000, scoped, tag = 'internal scratch']
  #allocation2 [shape = 'f32[8,256]{1,0:T(8,128)}', space=vmem, size = 0x2000, scoped, tag = 'scratch operand']
  %s0 = inlined_call_operand.hbm [shape: f32[2,256], index: 0, kind: input, shape index: {}]
  %s1 = inlined_call_operand.hbm [shape: f32[8,256], index: 1, kind: input, shape index: {}]
  %s2 = inlined_call_operand.hbm [shape: f32[8,256], index: 2, kind: input, shape index: {}]
  %s3 = inlined_call_operand.hbm [shape: f32[1,8,128], index: 3, kind: output, shape index: {}]
  %s4 = sld [smem:[#allocation0]]
  $region42: #{tpu_custom_call.1} parent=0
    _
  %s6 = ssub.s32 1, %s4
  %s7 = scalar_select 0, %s6, %s4
  $region1: #{tpu_custom_call.1} parent=0
    #allocation3 [shape = 'u8[2048]{0}', space=vmem, size = 0x800, scoped, tag = 'input window, operand 0, single buffered']
    #allocation4 [shape = 's32[1]{0}', space=sflag, size = 0x4, scoped, tag = 'scoped memory for tpu_custom_call.1']
    #allocation5 [shape = 's32[1]{0}', space=sflag, size = 0x4, scoped, tag = 'scoped memory for tpu_custom_call.1']
    #allocation6 [shape = 'u8[8192]{0}', space=vmem, size = 0x2000, scoped, tag = 'input window, operand 1, single buffered']
    #allocation7 [shape = 's32[1]{0}', space=sflag, size = 0x4, scoped, tag = 'scoped memory for tpu_custom_call.1']
    #allocation8 [shape = 'u8[8192]{0}', space=vmem, size = 0x2000, scoped, tag = 'input window, operand 2, single buffered']
    #allocation9 [shape = 'u8[4096]{0}', space=vmem, size = 0x1000, scoped, tag = 'output window, operand 0, single buffered']
    %8 = vsyncpa [#allocation4], 0
    %9 = vsyncpa [#allocation7], 0
    %10 = vsyncpa [#allocation5], 0
    // Predicated region
    $region2: #{tpu_custom_call.1} parent=1 // pred_check
      _
    $region3: #{tpu_custom_call.1} parent=1 // pred_check_branch
      %12 = sbr.rel (0) target = $region5
    $region4: #{tpu_custom_call.1} parent=1 // pred_region
      %14 = vsyncadd [#allocation4], 0
      %s16 = sshll.u32 %s0, 4
      %s17 = int_to_ptr.hbm [resolvable:$true] %s16
      %s18 = sshll.u32 [#allocation3], 4
      %s19 = int_to_ptr.vmem [resolvable:$true] %s18
      %21 = dma.hbm_to_vmem [thread:$0]  %s17, 64, %s19, [#allocation4]
    $region5: #{tpu_custom_call.1} parent=1 // pred_fallthru
      _
    // Predicated region
    $region6: #{tpu_custom_call.1} parent=1 // pred_check
      _
    $region7: #{tpu_custom_call.1} parent=1 // pred_check_branch
      %23 = sbr.rel (0) target = $region9
    $region8: #{tpu_custom_call.1} parent=1 // pred_region
      %s24 = sadd.s32 0, 0
      %26 = vsyncadd [#allocation7], 0
      %s27 = smul.addr %s24, 2
      %s28 = smul.addr %s27, 8
      %s29 = scalar_lea.hbm %s1, %s28
      %s31 = sshll.u32 %s29, 4
      %s32 = int_to_ptr.hbm [resolvable:$true] %s31
      %s33 = sshll.u32 [#allocation6], 4
      %s34 = int_to_ptr.vmem [resolvable:$true] %s33
      %36 = dma.hbm_to_vmem [thread:$0]  %s32, 256, %s34, [#allocation7]
    $region9: #{tpu_custom_call.1} parent=1 // pred_fallthru
      _
    // Predicated region
    $region10: #{tpu_custom_call.1} parent=1 // pred_check
      _
    $region11: #{tpu_custom_call.1} parent=1 // pred_check_branch
      %38 = sbr.rel (0) target = $region13
    $region12: #{tpu_custom_call.1} parent=1 // pred_region
      %s39 = sadd.s32 0, 0
      %41 = vsyncadd [#allocation7], 0
      %s42 = smul.addr %s39, 2
      %s43 = smul.addr %s42, 8
      %s44 = scalar_lea.hbm %s2, %s43
      %s46 = sshll.u32 %s44, 4
      %s47 = int_to_ptr.hbm [resolvable:$true] %s46
      %s48 = sshll.u32 [#allocation8], 4
      %s49 = int_to_ptr.vmem [resolvable:$true] %s48
      %51 = dma.hbm_to_vmem [thread:$0]  %s47, 256, %s49, [#allocation7]
    $region13: #{tpu_custom_call.1} parent=1 // pred_fallthru
      _
    // Predicated region
    $region14: #{tpu_custom_call.1} parent=1 // pred_check
      _
    $region15: #{tpu_custom_call.1} parent=1 // pred_check_branch
      %53 = sbr.rel (0) target = $region17
    $region16: #{tpu_custom_call.1} parent=1 // pred_region
      %55 = dma.done [#allocation4], 64
    $region17: #{tpu_custom_call.1} parent=1 // pred_fallthru
      _
    // Predicated region
    $region18: #{tpu_custom_call.1} parent=1 // pred_check
      _
    $region19: #{tpu_custom_call.1} parent=1 // pred_check_branch
      %57 = sbr.rel (0) target = $region21
    $region20: #{tpu_custom_call.1} parent=1 // pred_region
      %59 = dma.done [#allocation7], 256
    $region21: #{tpu_custom_call.1} parent=1 // pred_fallthru
      _
    // Predicated region
    $region22: #{tpu_custom_call.1} parent=1 // pred_check
      _
    $region23: #{tpu_custom_call.1} parent=1 // pred_check_branch
      %61 = sbr.rel (0) target = $region25
    $region24: #{tpu_custom_call.1} parent=1 // pred_region
      %63 = dma.done [#allocation7], 256
    $region25: #{tpu_custom_call.1} parent=1 // pred_fallthru
      _
    %s64 = sadd.s32 0, 0
    %s65 = sadd.s32 0, 0
    %p66 = scmp.eq.s32.totalorder 0, 0
    // Predicated region
    $region26: #{tpu_custom_call.1} parent=1 // pred_check
      %p67 = pneg %p66
    $region27: #{tpu_custom_call.1} parent=1 // pred_check_branch
      %69 = sbr.rel (%p67) target = $region29
    $region28: #{tpu_custom_call.1} parent=1 // pred_region
      %70 = vst [vmem:[#allocation2] sm:$0xff] 0.0
      %71 = vst [vmem:[#allocation2 + $0x8] sm:$0xff] 0.0
    $region29: #{tpu_custom_call.1} parent=1 // pred_fallthru
      _
    %v72 = vld [vmem:[#allocation6] sm:$0xff]
    %v73 = vld [vmem:[#allocation6 + $0x8] sm:$0xff]
    %v74 = vld [vmem:[#allocation8] sm:$0xff]
    %v75 = vld [vmem:[#allocation8 + $0x8] sm:$0xff]
    %v76 = vsub.f32 %v72, %v74
    %v77 = vsub.f32 %v73, %v75
    %78 = vrot.lane.b32.xlu0 %v76, 127
    %v79 = vpop.permute.xlu0 %78
    %80 = vrot.lane.b32.xlu0 %v77, 127
    %v81 = vpop.permute.xlu0 %80
    %v82 = vlaneseq
    %v83 = vand.u32 %v82, 127
    %vm84 = vcmp.lt.s32.totalorder %v83, 127
    %v85 = vsel %vm84, %v79, %v81
    %v86 = vsel %vm84, %v81, %v79
    %v87 = vsub.f32 %v85, %v76
    %v88 = vsub.f32 %v86, %v77
    %89 = vrot.lane.b32.xlu0 %v76, 112
    %v90 = vpop.permute.xlu0 %89
    %91 = vrot.lane.b32.xlu0 %v77, 112
    %v92 = vpop.permute.xlu0 %91
    %vm93 = vcmp.lt.s32.totalorder %v83, 112
    %v94 = vsel %vm93, %v90, %v92
    %v95 = vsel %vm93, %v92, %v90
    %v96 = vsub.f32 %v94, %v76
    %v97 = vsub.f32 %v95, %v77
    %v98 = vld [vmem:[#allocation3] sm:$0xf]
    %v99 = vmul.f32 %v76, %v76
    %v100 = vmul.f32 %v77, %v77
    %v101 = vmul.f32 %v87, %v87
    %v102 = vmul.f32 %v88, %v88
    %v104 = vperm.slane %v98, 0
    %v105 = vperm.slane %v98, 2
    %v108 = vperm.slane %v104, 0
    %v109 = vperm.slane %v105, 0
    %v110 = vmul.f32 %v101, %v108
    %v111 = vmul.f32 %v102, %v109
    %v112 = vadd.f32 %v99, %v110
    %v113 = vadd.f32 %v100, %v111
    %v114 = vmul.f32 %v96, %v96
    %v115 = vmul.f32 %v97, %v97
    %v116 = vperm.slane %v98, 1
    %v117 = vperm.slane %v98, 3
    %v120 = vperm.slane %v116, 1
    %v121 = vperm.slane %v117, 1
    %v122 = vmul.f32 %v114, %v120
    %v123 = vmul.f32 %v115, %v121
    %v124 = vadd.f32 %v112, %v122
    %v125 = vadd.f32 %v113, %v123
    %v126 = vld [vmem:[#allocation2] sm:$0xff]
    %v127 = vld [vmem:[#allocation2 + $0x8] sm:$0xff]
    %v128 = vadd.f32 %v126, %v124
    %v129 = vadd.f32 %v127, %v125
    %130 = vst [vmem:[#allocation2] sm:$0xff] %v128
    %131 = vst [vmem:[#allocation2 + $0x8] sm:$0xff] %v129
    // Predicated region
    $region30: #{tpu_custom_call.1} parent=1 // pred_check
      %p132 = pneg %p66
    $region31: #{tpu_custom_call.1} parent=1 // pred_check_branch
      %134 = sbr.rel (%p132) target = $region33
    $region32: #{tpu_custom_call.1} parent=1 // pred_region
      %v135 = vld [vmem:[#allocation2] sm:$0xff]
      %v136 = vld [vmem:[#allocation2 + $0x8] sm:$0xff]
      %v137 = vadd.f32 %v135, %v136
      %138 = vadd.xlane.f32.xlu0 %v137
      %v139 = vpop.xlane.xlu0 %138
      %v140 = vrot.slane %v139, 4
      %v141 = vadd.f32 %v139, %v140
      %v142 = vrot.slane %v141, 2
      %v143 = vadd.f32 %v141, %v142
      %v144 = vrot.slane %v143, 1
      %v145 = vadd.f32 %v143, %v144
      %s146 = vtos %v145
      %v147 = vstv %s146
      %148 = vst [vmem:[#allocation9] sm:$0xff] %v147
    $region33: #{tpu_custom_call.1} parent=1 // pred_fallthru
      _
    // Predicated region
    $region34: #{tpu_custom_call.1} parent=1 // pred_check
      _
    $region35: #{tpu_custom_call.1} parent=1 // pred_check_branch
      %150 = sbr.rel (0) target = $region37
    $region36: #{tpu_custom_call.1} parent=1 // pred_region
      %152 = vsyncadd [#allocation5], 0
      %s154 = sshll.u32 [#allocation9], 4
      %s155 = int_to_ptr.vmem [resolvable:$true] %s154
      %s156 = sshll.u32 %s3, 4
      %s157 = int_to_ptr.hbm [resolvable:$true] %s156
      %159 = dma.vmem_to_hbm [thread:$0]  %s155, 128, %s157, [#allocation5]
    $region37: #{tpu_custom_call.1} parent=1 // pred_fallthru
      _
    // Predicated region
    $region38: #{tpu_custom_call.1} parent=1 // pred_check
      _
    $region39: #{tpu_custom_call.1} parent=1 // pred_check_branch
      %161 = sbr.rel (0) target = $region41
    $region40: #{tpu_custom_call.1} parent=1 // pred_region
      %163 = dma.done [#allocation5], 128
    $region41: #{tpu_custom_call.1} parent=1 // pred_fallthru
      _
    %164 = vsyncpa [#allocation4], 1
    %165 = vsyncpa [#allocation7], 1
    %166 = vsyncpa [#allocation5], 1

</llo_original>
